<compile_context>
chip_gen: v7x
topology: tpu7x:2x2x1
jax: 0.10.0
libtpu: 0.0.40
codegen_flags: <defaults>
</compile_context>

<pallas_src>
import functools

import jax
import jax.numpy as jnp
from jax.experimental import pallas as pl
from jax.experimental.pallas import tpu as pltpu

_BIG = 10000000.0

# Optional v7x VALU trim: skip the online max / rescale and use a fixed shift m=0.
# Only numerically safe when |y_pred| << 80; kept off by default (exact semantics).
_ASSUME_BOUNDED_LOGITS = False


def _round_up(x, m):
    return (x + m - 1) // m * m


def _round_down(x, m):
    return max(m, x // m * m)


def _physical_vmem_bytes():
    """Per-core VMEM capacity, with a conservative (v7x) fallback."""
    try:
        v = int(pltpu.get_tpu_info().vmem_capacity_bytes)
        if v > 0:
            return min(v, 128 * 1024 * 1024)
    except Exception:
        pass
    return 64 * 1024 * 1024  # v7x per-TensorCore VMEM (smallest current generation)


def _choose_tiles(R, L, pred_itemsize, true_itemsize, vmem_bytes):
    """Pick (row_tile, l_tile) sized off the physical VMEM budget.

    VMEM per block element ~= 2x double-buffered y_pred + 2x double-buffered y_true
    + ~5 block-sized f32 temporaries from the where/exp chain.
    """
    min_isize = max(1, min(pred_itemsize, true_itemsize))
    sub = max(8, 32 // min_isize)          # sublane multiple of the narrowest input

    bytes_per_elem = 2 * pred_itemsize + 2 * true_itemsize + 5 * 4
    max_elems = max(sub * 128, int(vmem_bytes * 0.55) // bytes_per_elem)

    L128 = _round_up(L, 128)
    row_target = min(_round_up(R, sub), 512)   # prefer tall tiles: small grid_r /
                                               # small partial-sum output
    l_tile = min(L128, _round_down(max(max_elems // row_target, 128), 128))
    row_tile = min(_round_up(R, sub),
                   _round_down(max(max_elems // l_tile, sub), sub))

    # keep >= 2 row blocks so the "parallel" axis feeds both v7x TensorCores
    if R > sub:
        row_tile = min(row_tile, _round_up(pl.cdiv(R, 2), sub))
    # TODO(synk): for tiny-R / huge-L shapes grid_r==1 leaves one v7x core idle;
    # splitting L into independent halves with separate (m,s) state would fix it.

    # full-extent blocks are always layout-legal and need no masking
    if row_tile >= R:
        row_tile = R
    if l_tile >= L:
        l_tile = L
    return row_tile, l_tile


def _mlcce_kernel(y_pred_ref, y_true_ref, out_ref,
                  m_neg, s_neg, m_pos, s_pos, *,
                  num_rows, num_lanes, row_tile, l_tile,
                  mask_rows, mask_lanes, assume_bounded):
    """Online-logsumexp multi-label CCE over one (row_tile, l_tile) block.

    grid = (rows, L-chunks); L is the innermost ("arbitrary") axis and the (m, s)
    running-lse state lives in VMEM scratch.  The reference's implicit extra zero
    logit (the concatenated zeros column) is folded into the initial state
    m = 0, s = exp(0) = 1.
    """
    # program ids hoisted to kernel top level (NOT inside pl.when closures).
    ri = pl.program_id(0)
    li = pl.program_id(1)
    nl = pl.num_programs(1)
    row_start = ri * row_tile

    @pl.when(li == 0)
    def _():
        m_neg[...] = jnp.zeros_like(m_neg)
        s_neg[...] = jnp.ones_like(s_neg)
        m_pos[...] = jnp.zeros_like(m_pos)
        s_pos[...] = jnp.ones_like(s_pos)

    x = y_pred_ref[...].astype(jnp.float32)
    # native-dtype compare: y_true never materialized as a block-sized f32 temp
    is_pos = y_true_ref[...] != 0

    neg_keep = jnp.logical_not(is_pos)
    pos_keep = is_pos
    if mask_lanes:
        lane = li * l_tile + jax.lax.broadcasted_iota(jnp.int32, x.shape, 1)
        valid = lane < num_lanes
        neg_keep = jnp.logical_and(valid, neg_keep)
        pos_keep = jnp.logical_and(valid, pos_keep)

    if assume_bounded:
        # fixed shift m=0: drop the max tree + rescale (v7x VALU trim, flag-gated)
        s_neg[...] = s_neg[...] + jnp.sum(
            jnp.where(neg_keep, jnp.exp(x), 0.0), axis=-1, keepdims=True)
        s_pos[...] = s_pos[...] + jnp.sum(
            jnp.where(pos_keep, jnp.exp(-x), 0.0), axis=-1, keepdims=True)
    else:
        neg = jnp.where(neg_keep, x, -_BIG)     # positives / padded lanes masked out
        pos = jnp.where(pos_keep, -x, -_BIG)    # negatives / padded lanes masked out

        def online_update(v, m_ref, s_ref):
            m_new = jnp.maximum(m_ref[...], jnp.max(v, axis=-1, keepdims=True))
            s_ref[...] = (s_ref[...] * jnp.exp(m_ref[...] - m_new)
                          + jnp.sum(jnp.exp(v - m_new), axis=-1, keepdims=True))
            m_ref[...] = m_new

        online_update(neg, m_neg, s_neg)
        online_update(pos, m_pos, s_pos)

    @pl.when(li == nl - 1)
    def _():
        per_row = (m_neg[...] + jnp.log(s_neg[...])
                   + m_pos[...] + jnp.log(s_pos[...]))          # (row_tile, 1)
        if mask_rows:
            rows = row_start + jax.lax.broadcasted_iota(jnp.int32, per_row.shape, 0)
            per_row = jnp.where(rows < num_rows, per_row, 0.0)
        tile_sum = jnp.sum(per_row)
        # lane-dense (1, 128) output block: partial sum in lane 0, zeros elsewhere
        lane_idx = jax.lax.broadcasted_iota(jnp.int32, out_ref.shape, 1)
        out_ref[...] = jnp.where(lane_idx == 0, tile_sum, 0.0).astype(out_ref.dtype)


def multilabel_categorical_crossentropy(y_pred, y_true, *,
                                        assume_bounded_logits=_ASSUME_BOUNDED_LOGITS):
    """JAX/Pallas equivalent of MultiLabelCategoricalCrossEntropy.forward for the
    documented 2D layout [batch_size*num_classes, seq_len*seq_len] -> scalar loss."""
    assert y_pred.shape == y_true.shape
    assert y_pred.ndim == 2, "kernel implements the documented 2D layout"
    # TODO(synk): the 3-D branch of the torch module (sum over dim=1 then mean)
    # never triggers for the documented 2-D input and is not implemented.
    R, L = y_pred.shape

    vmem_bytes = _physical_vmem_bytes()
    row_tile, l_tile = _choose_tiles(
        R, L, jnp.dtype(y_pred.dtype).itemsize, jnp.dtype(y_true.dtype).itemsize,
        vmem_bytes)
    grid_r = pl.cdiv(R, row_tile)
    grid_l = pl.cdiv(L, l_tile)

    kernel = functools.partial(
        _mlcce_kernel,
        num_rows=R, num_lanes=L, row_tile=row_tile, l_tile=l_tile,
        mask_rows=(R % row_tile != 0), mask_lanes=(L % l_tile != 0),
        assume_bounded=assume_bounded_logits)

    partial_sums = pl.pallas_call(
        kernel,
        out_shape=jax.ShapeDtypeStruct((1, grid_r * 128), jnp.float32),
        grid_spec=pltpu.PrefetchScalarGridSpec(
            num_scalar_prefetch=0,
            grid=(grid_r, grid_l),             # reduction axis (L) last
            in_specs=[
                pl.BlockSpec((row_tile, l_tile), lambda i, l: (i, l)),
                pl.BlockSpec((row_tile, l_tile), lambda i, l: (i, l)),
            ],
            out_specs=pl.BlockSpec((1, 128), lambda i, l: (0, i)),
            scratch_shapes=[pltpu.VMEM((row_tile, 1), jnp.float32)] * 4,
        ),
        compiler_params=pltpu.CompilerParams(
            dimension_semantics=("parallel", "arbitrary"),
            vmem_limit_bytes=int(vmem_bytes * 5 // 8),   # ~40 MiB v7x, ~80 MiB v5e/v6e
        ),
    )(y_pred, y_true)

    # lane 0 of each 128-wide chunk holds a tile partial sum; the rest are zeros.
    return jnp.sum(partial_sums) / jnp.float32(R)


def _reference(y_pred, y_true):
    """Pure-JAX reference mirroring the torch code (sanity check)."""
    yp = (1.0 - 2.0 * y_true) * y_pred
    y_neg = yp - y_true * _BIG
    y_pos = yp - (1.0 - y_true) * _BIG
    zeros = jnp.zeros_like(yp[..., :1])
    y_neg = jnp.concatenate([y_neg, zeros], axis=-1)
    y_pos = jnp.concatenate([y_pos, zeros], axis=-1)
    neg_loss = jax.scipy.special.logsumexp(y_neg, axis=-1)
    pos_loss = jax.scipy.special.logsumexp(y_pos, axis=-1)
    return jnp.mean(neg_loss + pos_loss)


if __name__ == "__main__":
    # batch=2, num_classes=4, seq=8  ->  y_pred/y_true : [8, 64]
    batch, num_classes, seq = 2, 4, 8
    R, L = batch * num_classes, seq * seq

    key = jax.random.PRNGKey(0)
    k1, k2 = jax.random.split(key)
    y_pred = jax.random.normal(k1, (R, L), dtype=jnp.float32) * 3.0
    # y_true is a 0/1 mask -> ship it narrow (int8); compared natively in-kernel
    y_true = (jax.random.uniform(k2, (R, L)) < 0.1).astype(jnp.int8)

    loss = multilabel_categorical_crossentropy(y_pred, y_true)
    loss = jax.block_until_ready(loss)

    ref = jax.block_until_ready(_reference(y_pred, y_true.astype(jnp.float32)))
    assert jnp.allclose(loss, ref, rtol=1e-5, atol=1e-5), (loss, ref)

    print("KERNEL_OK")
</pallas_src>

<mosaic_0001>
module attributes {stable_mosaic.version = 11 : i64} {
  func.func @_mlcce_kernel(%arg0: i32, %arg1: i32, %arg2: memref<8x64xf32, #tpu.memory_space<vmem>>, %arg3: memref<8x64xi8, #tpu.memory_space<vmem>>, %arg4: memref<1x128xf32, #tpu.memory_space<vmem>>, %arg5: memref<8x1xf32, #tpu.memory_space<vmem>>, %arg6: memref<8x1xf32, #tpu.memory_space<vmem>>, %arg7: memref<8x1xf32, #tpu.memory_space<vmem>>, %arg8: memref<8x1xf32, #tpu.memory_space<vmem>>) attributes {dimension_semantics = [#tpu.dimension_semantics<parallel>, #tpu.dimension_semantics<arbitrary>], iteration_bounds = array<i64: 1, 1>, scalar_prefetch = 0 : i64, scratch_operands = 4 : i64, tpu.core_type = #tpu.core_type<tc>, window_params = [{transform_indices = @transform_0, window_bounds = array<i64: 8, 64>}, {transform_indices = @transform_1, window_bounds = array<i64: 8, 64>}, {transform_indices = @transform_2, window_bounds = array<i64: 1, 128>}]} {
    %c0_i32 = arith.constant 0 : i32
    %0 = arith.cmpi eq, %arg1, %c0_i32 : i32
    %1 = arith.extui %0 : i1 to i32
    %c0_i32_0 = arith.constant 0 : i32
    %2 = arith.cmpi ne, %1, %c0_i32_0 : i32
    scf.if %2 {
      %cst_33 = arith.constant 0.000000e+00 : f32
      %51 = vector.broadcast %cst_33 : f32 to vector<8x1xf32>
      %c0_34 = arith.constant 0 : index
      %c0_35 = arith.constant 0 : index
      %52 = vector.load %arg5[%c0_34, %c0_35] : memref<8x1xf32, #tpu.memory_space<vmem>>, vector<8x1xf32>
      tpu.vector_store %arg5[%c0_34, %c0_35], %51 {strides = array<i32>} : memref<8x1xf32, #tpu.memory_space<vmem>>, vector<8x1xf32>,
      %cst_36 = arith.constant 1.000000e+00 : f32
      %53 = vector.broadcast %cst_36 : f32 to vector<8x1xf32>
      %c0_37 = arith.constant 0 : index
      %c0_38 = arith.constant 0 : index
      %54 = vector.load %arg6[%c0_37, %c0_38] : memref<8x1xf32, #tpu.memory_space<vmem>>, vector<8x1xf32>
      tpu.vector_store %arg6[%c0_37, %c0_38], %53 {strides = array<i32>} : memref<8x1xf32, #tpu.memory_space<vmem>>, vector<8x1xf32>,
      %cst_39 = arith.constant 0.000000e+00 : f32
      %55 = vector.broadcast %cst_39 : f32 to vector<8x1xf32>
      %c0_40 = arith.constant 0 : index
      %c0_41 = arith.constant 0 : index
      %56 = vector.load %arg7[%c0_40, %c0_41] : memref<8x1xf32, #tpu.memory_space<vmem>>, vector<8x1xf32>
      tpu.vector_store %arg7[%c0_40, %c0_41], %55 {strides = array<i32>} : memref<8x1xf32, #tpu.memory_space<vmem>>, vector<8x1xf32>,
      %cst_42 = arith.constant 1.000000e+00 : f32
      %57 = vector.broadcast %cst_42 : f32 to vector<8x1xf32>
      %c0_43 = arith.constant 0 : index
      %c0_44 = arith.constant 0 : index
      %58 = vector.load %arg8[%c0_43, %c0_44] : memref<8x1xf32, #tpu.memory_space<vmem>>, vector<8x1xf32>
      tpu.vector_store %arg8[%c0_43, %c0_44], %57 {strides = array<i32>} : memref<8x1xf32, #tpu.memory_space<vmem>>, vector<8x1xf32>,
    } else {
    }
    %c0 = arith.constant 0 : index
    %c0_1 = arith.constant 0 : index
    %3 = vector.load %arg2[%c0, %c0_1] : memref<8x64xf32, #tpu.memory_space<vmem>>, vector<8x64xf32>
    %c0_2 = arith.constant 0 : index
    %c0_3 = arith.constant 0 : index
    %4 = vector.load %arg3[%c0_2, %c0_3] : memref<8x64xi8, #tpu.memory_space<vmem>>, vector<8x64xi8>
    %c0_i8 = arith.constant 0 : i8
    %5 = vector.broadcast %c0_i8 : i8 to vector<8x64xi8>
    %6 = arith.cmpi ne, %4, %5 : vector<8x64xi8>
    %cst = arith.constant dense<true> : vector<8x64xi1>
    %7 = arith.xori %6, %cst : vector<8x64xi1>
    %cst_4 = arith.constant -1.000000e+07 : f32
    %8 = vector.broadcast %cst_4 : f32 to vector<8x64xf32>
    %9 = arith.select %7, %3, %8 : vector<8x64xi1>, vector<8x64xf32>
    %cst_5 = arith.constant 0.000000e+00 : f32
    %10 = vector.broadcast %cst_5 : f32 to vector<8x64xf32>
    %11 = arith.subf %10, %3 : vector<8x64xf32>
    %cst_6 = arith.constant -1.000000e+07 : f32
    %12 = vector.broadcast %cst_6 : f32 to vector<8x64xf32>
    %13 = arith.select %6, %11, %12 : vector<8x64xi1>, vector<8x64xf32>
    %c0_7 = arith.constant 0 : index
    %c0_8 = arith.constant 0 : index
    %14 = vector.load %arg5[%c0_7, %c0_8] : memref<8x1xf32, #tpu.memory_space<vmem>>, vector<8x1xf32>
    %cst_9 = arith.constant dense<0xFF800000> : vector<8xf32>
    %15 = vector.multi_reduction <maximumf>, %9, %cst_9 [1] : vector<8x64xf32> to vector<8xf32>
    %16 = vector.shape_cast %15 : vector<8xf32> to vector<8x1xf32>
    %17 = arith.maximumf %14, %16 : vector<8x1xf32>
    %c0_10 = arith.constant 0 : index
    %c0_11 = arith.constant 0 : index
    %18 = vector.load %arg6[%c0_10, %c0_11] : memref<8x1xf32, #tpu.memory_space<vmem>>, vector<8x1xf32>
    %c0_12 = arith.constant 0 : index
    %c0_13 = arith.constant 0 : index
    %19 = vector.load %arg5[%c0_12, %c0_13] : memref<8x1xf32, #tpu.memory_space<vmem>>, vector<8x1xf32>
    %20 = arith.subf %19, %17 : vector<8x1xf32>
    %21 = math.exp %20 : vector<8x1xf32>
    %22 = arith.mulf %18, %21 : vector<8x1xf32>
    %23 = vector.broadcast %17 : vector<8x1xf32> to vector<8x64xf32>
    %24 = arith.subf %9, %23 : vector<8x64xf32>
    %25 = math.exp %24 : vector<8x64xf32>
    %cst_14 = arith.constant dense<0.000000e+00> : vector<8xf32>
    %26 = vector.multi_reduction <add>, %25, %cst_14 [1] : vector<8x64xf32> to vector<8xf32>
    %27 = vector.shape_cast %26 : vector<8xf32> to vector<8x1xf32>
    %28 = arith.addf %22, %27 : vector<8x1xf32>
    %c0_15 = arith.constant 0 : index
    %c0_16 = arith.constant 0 : index
    %29 = vector.load %arg6[%c0_15, %c0_16] : memref<8x1xf32, #tpu.memory_space<vmem>>, vector<8x1xf32>
    tpu.vector_store %arg6[%c0_15, %c0_16], %28 {strides = array<i32>} : memref<8x1xf32, #tpu.memory_space<vmem>>, vector<8x1xf32>,
    %c0_17 = arith.constant 0 : index
    %c0_18 = arith.constant 0 : index
    %30 = vector.load %arg5[%c0_17, %c0_18] : memref<8x1xf32, #tpu.memory_space<vmem>>, vector<8x1xf32>
    tpu.vector_store %arg5[%c0_17, %c0_18], %17 {strides = array<i32>} : memref<8x1xf32, #tpu.memory_space<vmem>>, vector<8x1xf32>,
    %c0_19 = arith.constant 0 : index
    %c0_20 = arith.constant 0 : index
    %31 = vector.load %arg7[%c0_19, %c0_20] : memref<8x1xf32, #tpu.memory_space<vmem>>, vector<8x1xf32>
    %cst_21 = arith.constant dense<0xFF800000> : vector<8xf32>
    %32 = vector.multi_reduction <maximumf>, %13, %cst_21 [1] : vector<8x64xf32> to vector<8xf32>
    %33 = vector.shape_cast %32 : vector<8xf32> to vector<8x1xf32>
    %34 = arith.maximumf %31, %33 : vector<8x1xf32>
    %c0_22 = arith.constant 0 : index
    %c0_23 = arith.constant 0 : index
    %35 = vector.load %arg8[%c0_22, %c0_23] : memref<8x1xf32, #tpu.memory_space<vmem>>, vector<8x1xf32>
    %c0_24 = arith.constant 0 : index
    %c0_25 = arith.constant 0 : index
    %36 = vector.load %arg7[%c0_24, %c0_25] : memref<8x1xf32, #tpu.memory_space<vmem>>, vector<8x1xf32>
    %37 = arith.subf %36, %34 : vector<8x1xf32>
    %38 = math.exp %37 : vector<8x1xf32>
    %39 = arith.mulf %35, %38 : vector<8x1xf32>
    %40 = vector.broadcast %34 : vector<8x1xf32> to vector<8x64xf32>
    %41 = arith.subf %13, %40 : vector<8x64xf32>
    %42 = math.exp %41 : vector<8x64xf32>
    %cst_26 = arith.constant dense<0.000000e+00> : vector<8xf32>
    %43 = vector.multi_reduction <add>, %42, %cst_26 [1] : vector<8x64xf32> to vector<8xf32>
    %44 = vector.shape_cast %43 : vector<8xf32> to vector<8x1xf32>
    %45 = arith.addf %39, %44 : vector<8x1xf32>
    %c0_27 = arith.constant 0 : index
    %c0_28 = arith.constant 0 : index
    %46 = vector.load %arg8[%c0_27, %c0_28] : memref<8x1xf32, #tpu.memory_space<vmem>>, vector<8x1xf32>
    tpu.vector_store %arg8[%c0_27, %c0_28], %45 {strides = array<i32>} : memref<8x1xf32, #tpu.memory_space<vmem>>, vector<8x1xf32>,
    %c0_29 = arith.constant 0 : index
    %c0_30 = arith.constant 0 : index
    %47 = vector.load %arg7[%c0_29, %c0_30] : memref<8x1xf32, #tpu.memory_space<vmem>>, vector<8x1xf32>
    tpu.vector_store %arg7[%c0_29, %c0_30], %34 {strides = array<i32>} : memref<8x1xf32, #tpu.memory_space<vmem>>, vector<8x1xf32>,
    %c0_i32_31 = arith.constant 0 : i32
    %48 = arith.cmpi eq, %arg1, %c0_i32_31 : i32
    %49 = arith.extui %48 : i1 to i32
    %c0_i32_32 = arith.constant 0 : i32
    %50 = arith.cmpi ne, %49, %c0_i32_32 : i32
    scf.if %50 {
      %c0_33 = arith.constant 0 : index
      %c0_34 = arith.constant 0 : index
      %51 = vector.load %arg5[%c0_33, %c0_34] : memref<8x1xf32, #tpu.memory_space<vmem>>, vector<8x1xf32>
      %c0_35 = arith.constant 0 : index
      %c0_36 = arith.constant 0 : index
      %52 = vector.load %arg6[%c0_35, %c0_36] : memref<8x1xf32, #tpu.memory_space<vmem>>, vector<8x1xf32>
      %53 = math.log %52 : vector<8x1xf32>
      %54 = arith.addf %51, %53 : vector<8x1xf32>
      %c0_37 = arith.constant 0 : index
      %c0_38 = arith.constant 0 : index
      %55 = vector.load %arg7[%c0_37, %c0_38] : memref<8x1xf32, #tpu.memory_space<vmem>>, vector<8x1xf32>
      %56 = arith.addf %54, %55 : vector<8x1xf32>
      %c0_39 = arith.constant 0 : index
      %c0_40 = arith.constant 0 : index
      %57 = vector.load %arg8[%c0_39, %c0_40] : memref<8x1xf32, #tpu.memory_space<vmem>>, vector<8x1xf32>
      %58 = math.log %57 : vector<8x1xf32>
      %59 = arith.addf %56, %58 : vector<8x1xf32>
      %60 = vector.shape_cast %59 : vector<8x1xf32> to vector<1x8x1xf32>
      %cst_41 = arith.constant dense<0.000000e+00> : vector<1xf32>
      %61 = vector.multi_reduction <add>, %60, %cst_41 [1, 2] : vector<1x8x1xf32> to vector<1xf32>
      %62 = vector.shape_cast %61 : vector<1xf32> to vector<1x1x1xf32>
      %63 = vector.extract %62[0, 0, 0] : f32 from vector<1x1x1xf32>
      %64 = tpu.iota {dimensions = array<i32: 1>} : vector<1x128xi32>
      %c0_i32_42 = arith.constant 0 : i32
      %65 = vector.broadcast %c0_i32_42 : i32 to vector<1x128xi32>
      %66 = arith.cmpi eq, %64, %65 : vector<1x128xi32>
      %cst_43 = arith.constant 0.000000e+00 : f32
      %67 = vector.broadcast %63 : f32 to vector<1x128xf32>
      %68 = vector.broadcast %cst_43 : f32 to vector<1x128xf32>
      %69 = arith.select %66, %67, %68 : vector<1x128xi1>, vector<1x128xf32>
      %c0_44 = arith.constant 0 : index
      %c0_45 = arith.constant 0 : index
      %70 = vector.load %arg4[%c0_44, %c0_45] : memref<1x128xf32, #tpu.memory_space<vmem>>, vector<1x128xf32>
      tpu.vector_store %arg4[%c0_44, %c0_45], %69 {strides = array<i32>} : memref<1x128xf32, #tpu.memory_space<vmem>>, vector<1x128xf32>,
    } else {
    }
    return
  }
  func.func @transform_0(%arg0: i32, %arg1: i32) -> (i32, i32) {
    %c0_i32 = arith.constant 0 : i32
    return %arg0, %arg1 : i32, i32
  }
  func.func @transform_1(%arg0: i32, %arg1: i32) -> (i32, i32) {
    %c0_i32 = arith.constant 0 : i32
    return %arg0, %arg1 : i32, i32
  }
  func.func @transform_2(%arg0: i32, %arg1: i32) -> (i32, i32) {
    %c0_i32 = arith.constant 0 : i32
    %c0_i32_0 = arith.constant 0 : i32
    return %c0_i32, %arg0 : i32, i32
  }
}

</mosaic_0001>

<llo_original>
// kernel: tpu_custom_call.1
$region0: #{tpu_custom_call.1}
  #allocation0 [shape = 'u32[]', space=smem, size = 0x4, offset = 0x4, fixed_abs, tag = 'smem constant byte address 0x4 - core index']
  #allocation1 [shape = 'u32[144,128]{1,0:T(1,128)}', space=vmem, size = 0x12000, scoped, tag = 'internal scratch']
  #allocation2 [shape = 'f32[8,1]{1,0:T(8,128)}', space=vmem, size = 0x1000, scoped, tag = 'scratch operand']
  #allocation3 [shape = 'f32[8,1]{1,0:T(8,128)}', space=vmem, size = 0x1000, scoped, tag = 'scratch operand']
  #allocation4 [shape = 'f32[8,1]{1,0:T(8,128)}', space=vmem, size = 0x1000, scoped, tag = 'scratch operand']
  #allocation5 [shape = 'f32[8,1]{1,0:T(8,128)}', space=vmem, size = 0x1000, scoped, tag = 'scratch operand']
  %s0 = inlined_call_operand.hbm [shape: f32[8,64], index: 0, kind: input, shape index: {}]
  %s1 = inlined_call_operand.vmem [shape: s8[8,64], index: 1, kind: input, shape index: {}]
  %s2 = inlined_call_operand.hbm [shape: f32[1,128], index: 2, kind: output, shape index: {}]
  %s3 = sld [smem:[#allocation0]]
  $region30: #{tpu_custom_call.1} parent=0
    _
  %s5 = ssub.s32 1, %s3
  %s6 = scalar_select 0, %s5, %s3
  $region1: #{tpu_custom_call.1} parent=0
    #allocation6 [shape = 'u8[4096]{0}', space=vmem, size = 0x1000, scoped, tag = 'input window, operand 0, single buffered']
    #allocation7 [shape = 's32[1]{0}', space=sflag, size = 0x4, scoped, tag = 'scoped memory for tpu_custom_call.1']
    #allocation8 [shape = 's32[1]{0}', space=sflag, size = 0x4, scoped, tag = 'scoped memory for tpu_custom_call.1']
    #allocation9 [shape = 'u8[512]{0}', space=vmem, size = 0x400, scoped, tag = 'output window, operand 0, single buffered']
    %7 = vsyncpa [#allocation7], 0
    %8 = vsyncpa [#allocation8], 0
    // Predicated region
    $region2: #{tpu_custom_call.1} parent=1 // pred_check
      _
    $region3: #{tpu_custom_call.1} parent=1 // pred_check_branch
      %10 = sbr.rel (0) target = $region5
    $region4: #{tpu_custom_call.1} parent=1 // pred_region
      %s12 = ssub.s32 128, 128
      %13 = vsyncadd [#allocation7], %s12
      %s15 = sshll.u32 [#allocation6], 4
      %s16 = int_to_ptr.vmem [resolvable:$true] %s15
      %18 = dma.hbm_to_vmem [thread:$0]  %s0, 128, %s16, [#allocation7]
    $region5: #{tpu_custom_call.1} parent=1 // pred_fallthru
      _
    // Predicated region
    $region6: #{tpu_custom_call.1} parent=1 // pred_check
      _
    $region7: #{tpu_custom_call.1} parent=1 // pred_check_branch
      %20 = sbr.rel (0) target = $region9
    $region8: #{tpu_custom_call.1} parent=1 // pred_region
      _
    $region9: #{tpu_custom_call.1} parent=1 // pred_fallthru
      _
    // Predicated region
    $region10: #{tpu_custom_call.1} parent=1 // pred_check
      _
    $region11: #{tpu_custom_call.1} parent=1 // pred_check_branch
      %22 = sbr.rel (0) target = $region13
    $region12: #{tpu_custom_call.1} parent=1 // pred_region
      %23 = dma.done [#allocation7], 128
    $region13: #{tpu_custom_call.1} parent=1 // pred_fallthru
      _
    %p26 = scmp.eq.s32.totalorder 0, 0
    // Predicated region
    $region14: #{tpu_custom_call.1} parent=1 // pred_check
      %p27 = pneg %p26
    $region15: #{tpu_custom_call.1} parent=1 // pred_check_branch
      %29 = sbr.rel (%p27) target = $region17
    $region16: #{tpu_custom_call.1} parent=1 // pred_region
      %vm30 = vcmask 7168
      %31 = vst.msk [vmem:[#allocation2] sm:$0xff] %vm30, 0.0
      %32 = vst.msk [vmem:[#allocation3] sm:$0xff] %vm30, 1.0
      %33 = vst.msk [vmem:[#allocation4] sm:$0xff] %vm30, 0.0
      %34 = vst.msk [vmem:[#allocation5] sm:$0xff] %vm30, 1.0
    $region17: #{tpu_custom_call.1} parent=1 // pred_fallthru
      _
    %v35 = vld [vmem:[#allocation6] sm:$0xff]
    %v36 = vld [vmem:[%s1] sm:$0x3]
    %vm37 = vnez %v36
    %vm38 = vmxor %vm37, 1
    %v39 = vsel %vm38, 16843009, 0
    %v40 = vunpack.c.0.s8 %v39
    %vm41 = vcmp.ne.s32.totalorder %v40, 0
    %v42 = vsel %vm41, %v35, -10000000.0
    %v43 = vsub.f32 0.0, %v35
    %v44 = vsel %vm37, 16843009, 0
    %v45 = vunpack.c.0.s8 %v44
    %vm46 = vcmp.ne.s32.totalorder %v45, 0
    %v47 = vsel %vm46, %v43, -10000000.0
    %v48 = vld [vmem:[#allocation2] sm:$0xff]
    %vm49 = vcmask 523264
    %v50 = vsel %vm49, %v42, -inf
    %51 = vmax.xlane.f32.xlu0 %v50
    %v52 = vpop.xlane.xlu0 %51
    %v53 = vmax.f32 %v48, %v52
    %v54 = vld [vmem:[#allocation3] sm:$0xff]
    %v55 = vsub.f32 %v48, %v53
    %v56 = vmul.f32 %v55, 1.442695
    %v57 = vpow.pop %v56
    %v58 = vmul.f32 %v54, %v57
    %60 = vset.pattern.permute.xlu0 0
    %61 = vperm.xlu0 %60, %v53
    %v62 = vpop.permute.xlu0 %61
    %v64 = vsub.f32 %v42, %v62
    %v65 = vmul.f32 %v64, 1.442695
    %v66 = vpow.pop %v65
    %v67 = vsel %vm49, %v66, 0.0
    %68 = vadd.xlane.f32.xlu0 %v67
    %v69 = vpop.xlane.xlu0 %68
    %v70 = vadd.f32 %v58, %v69
    %vm71 = vcmask 7168
    %72 = vst.msk [vmem:[#allocation3] sm:$0xff] %vm71, %v70
    %73 = vst.msk [vmem:[#allocation2] sm:$0xff] %vm71, %v53
    %v74 = vld [vmem:[#allocation4] sm:$0xff]
    %v75 = vsel %vm49, %v47, -inf
    %76 = vmax.xlane.f32.xlu0 %v75
    %v77 = vpop.xlane.xlu0 %76
    %v78 = vmax.f32 %v74, %v77
    %v79 = vld [vmem:[#allocation5] sm:$0xff]
    %v80 = vsub.f32 %v74, %v78
    %v81 = vmul.f32 %v80, 1.442695
    %v82 = vpow.pop %v81
    %v83 = vmul.f32 %v79, %v82
    %85 = vset.pattern.permute.xlu0 0
    %86 = vperm.xlu0 %85, %v78
    %v87 = vpop.permute.xlu0 %86
    %v89 = vsub.f32 %v47, %v87
    %v90 = vmul.f32 %v89, 1.442695
    %v91 = vpow.pop %v90
    %v92 = vsel %vm49, %v91, 0.0
    %93 = vadd.xlane.f32.xlu0 %v92
    %v94 = vpop.xlane.xlu0 %93
    %v95 = vadd.f32 %v83, %v94
    %96 = vst.msk [vmem:[#allocation5] sm:$0xff] %vm71, %v95
    %97 = vst.msk [vmem:[#allocation4] sm:$0xff] %vm71, %v78
    // Predicated region
    $region18: #{tpu_custom_call.1} parent=1 // pred_check
      %p98 = pneg %p26
    $region19: #{tpu_custom_call.1} parent=1 // pred_check_branch
      %100 = sbr.rel (%p98) target = $region21
    $region20: #{tpu_custom_call.1} parent=1 // pred_region
      %v101 = vld [vmem:[#allocation2] sm:$0xff]
      %v102 = vld [vmem:[#allocation3] sm:$0xff]
      %v103 = vlog2.pop %v102
      %v104 = vmul.f32 %v103, 0.6931472
      %v105 = vadd.f32 %v101, %v104
      %v106 = vld [vmem:[#allocation4] sm:$0xff]
      %v107 = vadd.f32 %v105, %v106
      %v108 = vld [vmem:[#allocation5] sm:$0xff]
      %v109 = vlog2.pop %v108
      %v110 = vmul.f32 %v109, 0.6931472
      %v111 = vadd.f32 %v107, %v110
      %v112 = vsel %vm71, %v111, 0.0
      %113 = vadd.xlane.f32.xlu0 %v112
      %v114 = vpop.xlane.xlu0 %113
      %v115 = vrot.slane %v114, 4
      %v116 = vadd.f32 %v114, %v115
      %v117 = vrot.slane %v116, 2
      %v118 = vadd.f32 %v116, %v117
      %v119 = vrot.slane %v118, 1
      %v120 = vadd.f32 %v118, %v119
      %s121 = vtos %v120
      %v122 = vlaneseq
      %v123 = vand.u32 %v122, 127
      %vm124 = vcmp.eq.s32.totalorder %v123, 0
      %v125 = vstv %s121
      %v126 = vsel %vm124, %v125, 0.0
      %127 = vst [vmem:[#allocation9] sm:$0x1] %v126
    $region21: #{tpu_custom_call.1} parent=1 // pred_fallthru
      _
    // Predicated region
    $region22: #{tpu_custom_call.1} parent=1 // pred_check
      _
    $region23: #{tpu_custom_call.1} parent=1 // pred_check_branch
      %129 = sbr.rel (0) target = $region25
    $region24: #{tpu_custom_call.1} parent=1 // pred_region
      %s131 = ssub.s32 16, 16
      %132 = vsyncadd [#allocation8], %s131
      %s134 = sshll.u32 [#allocation9], 4
      %s135 = int_to_ptr.vmem [resolvable:$true] %s134
      %137 = dma.vmem_to_hbm [thread:$0]  %s135, 16, %s2, [#allocation8]
    $region25: #{tpu_custom_call.1} parent=1 // pred_fallthru
      _
    // Predicated region
    $region26: #{tpu_custom_call.1} parent=1 // pred_check
      _
    $region27: #{tpu_custom_call.1} parent=1 // pred_check_branch
      %139 = sbr.rel (0) target = $region29
    $region28: #{tpu_custom_call.1} parent=1 // pred_region
      %140 = dma.done [#allocation8], 16
    $region29: #{tpu_custom_call.1} parent=1 // pred_fallthru
      _
    %141 = vsyncpa [#allocation7], 1
    %142 = vsyncpa [#allocation8], 1

</llo_original>
